<compile_context>
chip_gen: v6e
topology: v6e:2x2x1
jax: 0.10.0
libtpu: 0.0.40
codegen_flags: <defaults>
</compile_context>

<pallas_src>
import jax
import jax.numpy as jnp
from jax import lax
from jax.experimental import pallas as pl
from jax.experimental.pallas import tpu as pltpu

# ---- module hyper-parameters (from the PyTorch __init__) --------------------
_C1_OUT, _C1_K, _C1_S, _C1_P = 3, 1, 2, 1            # Conv1d(1, 3, 1, stride=2, padding=1)
_C2_OUT, _C2_IN, _C2_K, _C2_S, _C2_P = 5, 6, 7, 2, 1  # Conv2d(6, 5, 7, stride=2, padding=1)
_LANE = 128


def _round_up(x, m):
    return (x + m - 1) // m * m


# -----------------------------------------------------------------------------
# Fused kernel: (a) Conv1d(k=1) + tanh-GELU chain, (b) Conv2d as one MXU matmul.
# No grid — single invocation, full-array blocks (total residency << 1 MiB).
# -----------------------------------------------------------------------------
def _fused_kernel(xs_ref, w1_ref, b1_ref, pat_ref, wmat_ref, brow_ref,
                  o1_ref, o2_ref):
    # ---- Conv1d(1->3, k=1; stride folded in wrapper) + GELU chain (f32 VPU/EUP).
    x = xs_ref[...]                                   # (N, Lpad) f32, lane-dense
    for c in range(_C1_OUT):                          # unrolled over 3 channels
        v1 = x * w1_ref[c] + b1_ref[c]                # k=1 conv == scale + shift
        inner = v1 * (1.0 + 0.044715 * (v1 * v1))     # == v1 + 0.044715 * v1**3
        o1_ref[c] = (0.5 * v1) * (1.0 + jnp.tanh(0.7978845608028654 * inner))

    # ---- Conv2d(6->5, k=7) as ONE bf16 MXU matmul, f32 accumulation + bias row.
    o2_ref[...] = jnp.dot(pat_ref[...], wmat_ref[...],
                          preferred_element_type=jnp.float32) + brow_ref[...]


# -----------------------------------------------------------------------------
# Static, per-model weight packing (hoisted out of the per-call path).
# -----------------------------------------------------------------------------
def pack_params(w1, b1, w2, b2):
    cout, cin, kh, kw = w2.shape
    k = cin * kh * kw
    n_p = _round_up(cout, _LANE)                       # lane-dense output width
    wmat = w2.reshape(cout, k).T.astype(jnp.bfloat16)  # (K, cout) bf16 MXU operand
    wmat = jnp.pad(wmat, ((0, 0), (0, n_p - cout)))    # (K, 128)
    brow = jnp.pad(b2.astype(jnp.float32).reshape(1, cout),
                   ((0, 0), (0, n_p - cout)))          # (1, 128) f32 bias row
    return dict(
        w1=w1.reshape(_C1_OUT).astype(jnp.float32),    # (3,) SMEM scalars
        b1=b1.reshape(_C1_OUT).astype(jnp.float32),    # (3,) SMEM scalars
        wmat=wmat,
        brow=brow,
    )


# -----------------------------------------------------------------------------
# Forward: builds the activation-dependent operands and issues ONE pallas_call.
# The im2col glue stays in the (jitted) wrapper, where XLA fuses it; only the
# contraction and the elementwise chain run in the Pallas kernel.
# -----------------------------------------------------------------------------
def _forward(params, x1d, x2d):
    # --- conv1d taps: stride-2 selection of the (pad=1) padded signal ---------
    n1, _, L = x1d.shape
    lout = (L + 2 * _C1_P - _C1_K) // _C1_S + 1
    lpad = _round_up(lout, _LANE)
    xp = jnp.pad(x1d[:, 0, :].astype(jnp.float32), ((0, 0), (_C1_P, _C1_P)))
    xs = xp[:, 0:_C1_S * lout:_C1_S]                   # (N, lout) conv taps
    xs = jnp.pad(xs, ((0, 0), (0, lpad - lout)))       # (N, lpad) lane-dense

    # --- conv2d im2col (activation-dependent; fuses under jit) ----------------
    n2, cin, H, W = x2d.shape
    ho = (H + 2 * _C2_P - _C2_K) // _C2_S + 1
    wo = (W + 2 * _C2_P - _C2_K) // _C2_S + 1
    xp2 = jnp.pad(x2d.astype(jnp.float32),
                  ((0, 0), (0, 0), (_C2_P, _C2_P), (_C2_P, _C2_P)))
    taps = [xp2[:, :, dh:dh + _C2_S * ho:_C2_S, dw:dw + _C2_S * wo:_C2_S]
            for dh in range(_C2_K) for dw in range(_C2_K)]
    pat = jnp.stack(taps, axis=2)                      # (N, Cin, KH*KW, Ho, Wo)
    pat = pat.transpose(0, 3, 4, 1, 2).reshape(n2 * ho * wo, cin * _C2_K * _C2_K)
    pat = pat.astype(jnp.bfloat16)                     # (72, 295) bf16 — no K/M pad

    m, k = pat.shape
    n_p = params["wmat"].shape[1]
    cost = pl.CostEstimate(
        flops=2 * m * k * n_p + 10 * n1 * _C1_OUT * lpad,
        transcendentals=n1 * _C1_OUT * lpad,
        bytes_accessed=(xs.size * 4 + pat.size * 2 + params["wmat"].size * 2
                        + params["brow"].size * 4 + 24
                        + 4 * (_C1_OUT * n1 * lpad + m * n_p)),
    )

    o1, o2 = pl.pallas_call(
        _fused_kernel,
        out_shape=(jax.ShapeDtypeStruct((_C1_OUT, n1, lpad), jnp.float32),
                   jax.ShapeDtypeStruct((m, n_p), jnp.float32)),
        in_specs=[
            pl.BlockSpec(memory_space=pltpu.MemorySpace.VMEM),   # xs
            pl.BlockSpec(memory_space=pltpu.MemorySpace.SMEM),   # w1 scalars
            pl.BlockSpec(memory_space=pltpu.MemorySpace.SMEM),   # b1 scalars
            pl.BlockSpec(memory_space=pltpu.MemorySpace.VMEM),   # pat
            pl.BlockSpec(memory_space=pltpu.MemorySpace.VMEM),   # wmat
            pl.BlockSpec(memory_space=pltpu.MemorySpace.VMEM),   # brow
        ],
        cost_estimate=cost,
    )(xs, params["w1"], params["b1"], pat, params["wmat"], params["brow"])

    v10 = o1.transpose(1, 0, 2)[:, :, :lout]                     # (N, 3, Lout)
    v11 = o2[:, :_C2_OUT].reshape(n2, ho, wo, _C2_OUT).transpose(0, 3, 1, 2)
    return v10, v11


forward = jax.jit(_forward)


# -----------------------------------------------------------------------------
# Pure-JAX references (correctness checking only; HIGHEST precision).
# -----------------------------------------------------------------------------
def _ref_conv1d_gelu(x, w, b):
    v1 = lax.conv_general_dilated(
        x, w, window_strides=(_C1_S,), padding=[(_C1_P, _C1_P)],
        dimension_numbers=("NCH", "OIH", "NCH"),
        precision=lax.Precision.HIGHEST) + b.reshape(1, _C1_OUT, 1)
    v2 = v1 * 0.5
    v6 = v1 + (v1 * v1 * v1) * 0.044715
    return v2 * (jnp.tanh(v6 * 0.7978845608028654) + 1.0)


def _ref_conv2d(x, w, b):
    return lax.conv_general_dilated(
        x, w, window_strides=(_C2_S, _C2_S), padding=[(_C2_P, _C2_P)] * 2,
        dimension_numbers=("NCHW", "OIHW", "NCHW"),
        precision=lax.Precision.HIGHEST) + b.reshape(1, -1, 1, 1)


if __name__ == "__main__":
    key = jax.random.PRNGKey(0)
    k1, k2, k3, k4, k5, k6 = jax.random.split(key, 6)

    # Deterministic synthetic parameters (shapes from the module's __init__).
    w1 = jax.random.normal(k1, (3, 1, 1), jnp.float32) * 0.5      # Conv1d(1, 3, 1)
    b1 = jax.random.normal(k2, (3,), jnp.float32) * 0.1
    w2 = jax.random.normal(k3, (5, 6, 7, 7), jnp.float32) * 0.05  # Conv2d(6, 5, 7)
    b2 = jax.random.normal(k4, (5,), jnp.float32) * 0.1

    # Valid Conv1d input (N, 1, L) and a valid 6-channel NCHW input for Conv2d.
    x1d = jax.random.normal(k5, (2, 1, 128), jnp.float32)
    x2d = jax.random.normal(k6, (2, 6, 16, 16), jnp.float32)

    params = pack_params(w1, b1, w2, b2)               # hoisted, once per model
    v10, v11 = jax.block_until_ready(forward(params, x1d, x2d))

    # --- conv1d + fused GELU chain (exact f32 path) ---------------------------
    v10_ref = _ref_conv1d_gelu(x1d, w1, b1)
    assert v10.shape == v10_ref.shape, (v10.shape, v10_ref.shape)
    assert float(jnp.max(jnp.abs(v10 - v10_ref))) < 1e-4

    # --- conv2d: tight check against a bf16-operand-matched f32 reference ----
    x2d_r = x2d.astype(jnp.bfloat16).astype(jnp.float32)
    w2_r = w2.astype(jnp.bfloat16).astype(jnp.float32)
    v11_bf_ref = _ref_conv2d(x2d_r, w2_r, b2)
    assert v11.shape == v11_bf_ref.shape, (v11.shape, v11_bf_ref.shape)
    assert float(jnp.max(jnp.abs(v11 - v11_bf_ref))) < 1e-3

    # --- conv2d: semantic sanity check against the full-f32 reference --------
    v11_ref = _ref_conv2d(x2d, w2, b2)
    assert float(jnp.max(jnp.abs(v11 - v11_ref))) < 1e-1

    print("KERNEL_OK")
</pallas_src>

<mosaic_0001>
module attributes {stable_mosaic.version = 11 : i64} {
  func.func @_fused_kernel(%arg0: memref<2x128xf32, #tpu.memory_space<vmem>>, %arg1: memref<3xf32, #tpu.memory_space<smem>>, %arg2: memref<3xf32, #tpu.memory_space<smem>>, %arg3: memref<72x294xbf16, #tpu.memory_space<vmem>>, %arg4: memref<294x128xbf16, #tpu.memory_space<vmem>>, %arg5: memref<1x128xf32, #tpu.memory_space<vmem>>, %arg6: memref<3x2x128xf32, #tpu.memory_space<vmem>>, %arg7: memref<72x128xf32, #tpu.memory_space<vmem>>) attributes {dimension_semantics = [], scalar_prefetch = 0 : i64, scratch_operands = 0 : i64, tpu.core_type = #tpu.core_type<tc>} {
    %c0 = arith.constant 0 : index
    %c0_0 = arith.constant 0 : index
    %0 = vector.load %arg0[%c0, %c0_0] : memref<2x128xf32, #tpu.memory_space<vmem>>, vector<2x128xf32>
    %c0_1 = arith.constant 0 : index
    %1 = memref.load %arg1[%c0_1] : memref<3xf32, #tpu.memory_space<smem>>
    %2 = vector.broadcast %1 : f32 to vector<2x128xf32>
    %3 = arith.mulf %0, %2 : vector<2x128xf32>
    %c0_2 = arith.constant 0 : index
    %4 = memref.load %arg2[%c0_2] : memref<3xf32, #tpu.memory_space<smem>>
    %5 = vector.broadcast %4 : f32 to vector<2x128xf32>
    %6 = arith.addf %3, %5 : vector<2x128xf32>
    %7 = arith.mulf %6, %6 : vector<2x128xf32>
    %cst = arith.constant 4.471500e-02 : f32
    %8 = vector.broadcast %cst : f32 to vector<2x128xf32>
    %9 = arith.mulf %8, %7 : vector<2x128xf32>
    %cst_3 = arith.constant 1.000000e+00 : f32
    %10 = vector.broadcast %cst_3 : f32 to vector<2x128xf32>
    %11 = arith.addf %10, %9 : vector<2x128xf32>
    %12 = arith.mulf %6, %11 : vector<2x128xf32>
    %cst_4 = arith.constant 5.000000e-01 : f32
    %13 = vector.broadcast %cst_4 : f32 to vector<2x128xf32>
    %14 = arith.mulf %13, %6 : vector<2x128xf32>
    %cst_5 = arith.constant 0.797884583 : f32
    %15 = vector.broadcast %cst_5 : f32 to vector<2x128xf32>
    %16 = arith.mulf %15, %12 : vector<2x128xf32>
    %17 = math.tanh %16 : vector<2x128xf32>
    %cst_6 = arith.constant 1.000000e+00 : f32
    %18 = vector.broadcast %cst_6 : f32 to vector<2x128xf32>
    %19 = arith.addf %18, %17 : vector<2x128xf32>
    %20 = arith.mulf %14, %19 : vector<2x128xf32>
    %c0_7 = arith.constant 0 : index
    %c0_8 = arith.constant 0 : index
    %c0_9 = arith.constant 0 : index
    %21 = vector.load %arg6[%c0_7, %c0_8, %c0_9] : memref<3x2x128xf32, #tpu.memory_space<vmem>>, vector<1x2x128xf32>
    %22 = vector.shape_cast %21 : vector<1x2x128xf32> to vector<2x128xf32>
    %23 = vector.shape_cast %20 : vector<2x128xf32> to vector<1x2x128xf32>
    tpu.vector_store %arg6[%c0_7, %c0_8, %c0_9], %23 {strides = array<i32>} : memref<3x2x128xf32, #tpu.memory_space<vmem>>, vector<1x2x128xf32>,
    %c1 = arith.constant 1 : index
    %24 = memref.load %arg1[%c1] : memref<3xf32, #tpu.memory_space<smem>>
    %25 = vector.broadcast %24 : f32 to vector<2x128xf32>
    %26 = arith.mulf %0, %25 : vector<2x128xf32>
    %c1_10 = arith.constant 1 : index
    %27 = memref.load %arg2[%c1_10] : memref<3xf32, #tpu.memory_space<smem>>
    %28 = vector.broadcast %27 : f32 to vector<2x128xf32>
    %29 = arith.addf %26, %28 : vector<2x128xf32>
    %30 = arith.mulf %29, %29 : vector<2x128xf32>
    %cst_11 = arith.constant 4.471500e-02 : f32
    %31 = vector.broadcast %cst_11 : f32 to vector<2x128xf32>
    %32 = arith.mulf %31, %30 : vector<2x128xf32>
    %cst_12 = arith.constant 1.000000e+00 : f32
    %33 = vector.broadcast %cst_12 : f32 to vector<2x128xf32>
    %34 = arith.addf %33, %32 : vector<2x128xf32>
    %35 = arith.mulf %29, %34 : vector<2x128xf32>
    %cst_13 = arith.constant 5.000000e-01 : f32
    %36 = vector.broadcast %cst_13 : f32 to vector<2x128xf32>
    %37 = arith.mulf %36, %29 : vector<2x128xf32>
    %cst_14 = arith.constant 0.797884583 : f32
    %38 = vector.broadcast %cst_14 : f32 to vector<2x128xf32>
    %39 = arith.mulf %38, %35 : vector<2x128xf32>
    %40 = math.tanh %39 : vector<2x128xf32>
    %cst_15 = arith.constant 1.000000e+00 : f32
    %41 = vector.broadcast %cst_15 : f32 to vector<2x128xf32>
    %42 = arith.addf %41, %40 : vector<2x128xf32>
    %43 = arith.mulf %37, %42 : vector<2x128xf32>
    %c1_16 = arith.constant 1 : index
    %c0_17 = arith.constant 0 : index
    %c0_18 = arith.constant 0 : index
    %44 = vector.load %arg6[%c1_16, %c0_17, %c0_18] : memref<3x2x128xf32, #tpu.memory_space<vmem>>, vector<1x2x128xf32>
    %45 = vector.shape_cast %44 : vector<1x2x128xf32> to vector<2x128xf32>
    %46 = vector.shape_cast %43 : vector<2x128xf32> to vector<1x2x128xf32>
    tpu.vector_store %arg6[%c1_16, %c0_17, %c0_18], %46 {strides = array<i32>} : memref<3x2x128xf32, #tpu.memory_space<vmem>>, vector<1x2x128xf32>,
    %c2 = arith.constant 2 : index
    %47 = memref.load %arg1[%c2] : memref<3xf32, #tpu.memory_space<smem>>
    %48 = vector.broadcast %47 : f32 to vector<2x128xf32>
    %49 = arith.mulf %0, %48 : vector<2x128xf32>
    %c2_19 = arith.constant 2 : index
    %50 = memref.load %arg2[%c2_19] : memref<3xf32, #tpu.memory_space<smem>>
    %51 = vector.broadcast %50 : f32 to vector<2x128xf32>
    %52 = arith.addf %49, %51 : vector<2x128xf32>
    %53 = arith.mulf %52, %52 : vector<2x128xf32>
    %cst_20 = arith.constant 4.471500e-02 : f32
    %54 = vector.broadcast %cst_20 : f32 to vector<2x128xf32>
    %55 = arith.mulf %54, %53 : vector<2x128xf32>
    %cst_21 = arith.constant 1.000000e+00 : f32
    %56 = vector.broadcast %cst_21 : f32 to vector<2x128xf32>
    %57 = arith.addf %56, %55 : vector<2x128xf32>
    %58 = arith.mulf %52, %57 : vector<2x128xf32>
    %cst_22 = arith.constant 5.000000e-01 : f32
    %59 = vector.broadcast %cst_22 : f32 to vector<2x128xf32>
    %60 = arith.mulf %59, %52 : vector<2x128xf32>
    %cst_23 = arith.constant 0.797884583 : f32
    %61 = vector.broadcast %cst_23 : f32 to vector<2x128xf32>
    %62 = arith.mulf %61, %58 : vector<2x128xf32>
    %63 = math.tanh %62 : vector<2x128xf32>
    %cst_24 = arith.constant 1.000000e+00 : f32
    %64 = vector.broadcast %cst_24 : f32 to vector<2x128xf32>
    %65 = arith.addf %64, %63 : vector<2x128xf32>
    %66 = arith.mulf %60, %65 : vector<2x128xf32>
    %c2_25 = arith.constant 2 : index
    %c0_26 = arith.constant 0 : index
    %c0_27 = arith.constant 0 : index
    %67 = vector.load %arg6[%c2_25, %c0_26, %c0_27] : memref<3x2x128xf32, #tpu.memory_space<vmem>>, vector<1x2x128xf32>
    %68 = vector.shape_cast %67 : vector<1x2x128xf32> to vector<2x128xf32>
    %69 = vector.shape_cast %66 : vector<2x128xf32> to vector<1x2x128xf32>
    tpu.vector_store %arg6[%c2_25, %c0_26, %c0_27], %69 {strides = array<i32>} : memref<3x2x128xf32, #tpu.memory_space<vmem>>, vector<1x2x128xf32>,
    %c0_28 = arith.constant 0 : index
    %c0_29 = arith.constant 0 : index
    %70 = vector.load %arg3[%c0_28, %c0_29] : memref<72x294xbf16, #tpu.memory_space<vmem>>, vector<72x294xbf16>
    %c0_30 = arith.constant 0 : index
    %c0_31 = arith.constant 0 : index
    %71 = vector.load %arg4[%c0_30, %c0_31] : memref<294x128xbf16, #tpu.memory_space<vmem>>, vector<294x128xbf16>
    %cst_32 = arith.constant dense<0.000000e+00> : vector<72x128xf32>
    %72 = tpu.matmul %70, %71, %cst_32 {dimension_numbers = #tpu.dot_dimension_numbers<[1], [0], [0], [1], [0, 0, 1, 1], [], []>} : vector<72x294xbf16>, vector<294x128xbf16>, vector<72x128xf32> -> vector<72x128xf32>
    %c0_33 = arith.constant 0 : index
    %c0_34 = arith.constant 0 : index
    %73 = vector.load %arg5[%c0_33, %c0_34] : memref<1x128xf32, #tpu.memory_space<vmem>>, vector<1x128xf32>
    %74 = vector.broadcast %73 : vector<1x128xf32> to vector<72x128xf32>
    %75 = arith.addf %72, %74 : vector<72x128xf32>
    %c0_35 = arith.constant 0 : index
    %c0_36 = arith.constant 0 : index
    %76 = vector.load %arg7[%c0_35, %c0_36] : memref<72x128xf32, #tpu.memory_space<vmem>>, vector<72x128xf32>
    tpu.vector_store %arg7[%c0_35, %c0_36], %75 {strides = array<i32>} : memref<72x128xf32, #tpu.memory_space<vmem>>, vector<72x128xf32>,
    return
  }
}

</mosaic_0001>

<llo_original>
// kernel: _forward.1
$region0: #{_forward.1}
  #allocation0 [shape = 'u32[]', space=smem, size = 0x4, offset = 0x4, fixed_abs, tag = 'smem constant byte address 0x4 - core index']
  #allocation1 [shape = 'u32[144,128]{1,0:T(1,128)}', space=vmem, size = 0x12000, scoped, tag = 'internal scratch']
  %s0 = inlined_call_operand.vmem [shape: f32[2,128], index: 0, kind: input, shape index: {}]
  %s1 = inlined_call_operand.vmem [shape: f32[3], index: 1, kind: input, shape index: {}]
  %s2 = inlined_call_operand.vmem [shape: f32[3], index: 2, kind: input, shape index: {}]
  %s3 = inlined_call_operand.vmem [shape: bf16[72,294], index: 3, kind: input, shape index: {}]
  %s4 = inlined_call_operand.vmem [shape: bf16[294,128], index: 4, kind: input, shape index: {}]
  %s5 = inlined_call_operand.vmem [shape: f32[1,128], index: 5, kind: input, shape index: {}]
  %s6 = inlined_call_operand.hbm [shape: f32[3,2,128], index: 6, kind: output, shape index: {0}]
  %s7 = inlined_call_operand.vmem [shape: f32[72,128], index: 7, kind: output, shape index: {1}]
  %8 = xla_tuple %s6, %s7
  %s9 = sld [smem:[#allocation0]]
  $region50: #{_forward.1} parent=0
    _
  %s11 = ssub.s32 1, %s9
  %s12 = scalar_select 0, %s11, %s9
  $region1: #{_forward.1} parent=0
    #allocation2 [shape = 'u8[512]{0}', space=smem, size = 0x200, scoped, tag = 'input window, operand 1, single buffered']
    #allocation3 [shape = 's32[1]{0}', space=sflag, size = 0x4, scoped, tag = 'scoped memory for _forward.1']
    #allocation4 [shape = 's32[1]{0}', space=sflag, size = 0x4, scoped, tag = 'scoped memory for _forward.1']
    #allocation5 [shape = 'u8[512]{0}', space=smem, size = 0x200, scoped, tag = 'input window, operand 2, single buffered']
    #allocation6 [shape = 's32[1]{0}', space=sflag, size = 0x4, scoped, tag = 'scoped memory for _forward.1']
    #allocation7 [shape = 'u8[3072]{0}', space=vmem, size = 0xc00, scoped, tag = 'output window, operand 0, single buffered']
    %13 = vsyncpa [#allocation4], 0
    %14 = vsyncpa [#allocation6], 0
    %15 = vsyncpa [#allocation3], 0
    // Predicated region
    $region2: #{_forward.1} parent=1 // pred_check
      _
    $region3: #{_forward.1} parent=1 // pred_check_branch
      %17 = sbr.rel (0) target = $region5
    $region4: #{_forward.1} parent=1 // pred_region
      _
    $region5: #{_forward.1} parent=1 // pred_fallthru
      _
    // Predicated region
    $region6: #{_forward.1} parent=1 // pred_check
      _
    $region7: #{_forward.1} parent=1 // pred_check_branch
      %19 = sbr.rel (0) target = $region9
    $region8: #{_forward.1} parent=1 // pred_region
      %s21 = ssub.s32 16, 16
      %22 = vsyncadd [#allocation4], %s21
      %s24 = sshll.u32 %s1, 4
      %s25 = int_to_ptr.vmem [resolvable:$true] %s24
      %27 = dma.vmem_to_smem %s25, 16, [#allocation2], [#allocation4]
    $region9: #{_forward.1} parent=1 // pred_fallthru
      _
    // Predicated region
    $region10: #{_forward.1} parent=1 // pred_check
      _
    $region11: #{_forward.1} parent=1 // pred_check_branch
      %29 = sbr.rel (0) target = $region13
    $region12: #{_forward.1} parent=1 // pred_region
      %s31 = ssub.s32 16, 16
      %32 = vsyncadd [#allocation6], %s31
      %s34 = sshll.u32 %s2, 4
      %s35 = int_to_ptr.vmem [resolvable:$true] %s34
      %37 = dma.vmem_to_smem %s35, 16, [#allocation5], [#allocation6]
    $region13: #{_forward.1} parent=1 // pred_fallthru
      _
    // Predicated region
    $region14: #{_forward.1} parent=1 // pred_check
      _
    $region15: #{_forward.1} parent=1 // pred_check_branch
      %39 = sbr.rel (0) target = $region17
    $region16: #{_forward.1} parent=1 // pred_region
      _
    $region17: #{_forward.1} parent=1 // pred_fallthru
      _
    // Predicated region
    $region18: #{_forward.1} parent=1 // pred_check
      _
    $region19: #{_forward.1} parent=1 // pred_check_branch
      %41 = sbr.rel (0) target = $region21
    $region20: #{_forward.1} parent=1 // pred_region
      _
    $region21: #{_forward.1} parent=1 // pred_fallthru
      _
    // Predicated region
    $region22: #{_forward.1} parent=1 // pred_check
      _
    $region23: #{_forward.1} parent=1 // pred_check_branch
      %43 = sbr.rel (0) target = $region25
    $region24: #{_forward.1} parent=1 // pred_region
      _
    $region25: #{_forward.1} parent=1 // pred_fallthru
      _
    // Predicated region
    $region26: #{_forward.1} parent=1 // pred_check
      _
    $region27: #{_forward.1} parent=1 // pred_check_branch
      %45 = sbr.rel (0) target = $region29
    $region28: #{_forward.1} parent=1 // pred_region
      %46 = dma.done [#allocation4], 16
    $region29: #{_forward.1} parent=1 // pred_fallthru
      _
    // Predicated region
    $region30: #{_forward.1} parent=1 // pred_check
      _
    $region31: #{_forward.1} parent=1 // pred_check_branch
      %48 = sbr.rel (0) target = $region33
    $region32: #{_forward.1} parent=1 // pred_region
      %49 = dma.done [#allocation6], 16
    $region33: #{_forward.1} parent=1 // pred_fallthru
      _
    %50 = sfence
    %v52 = vld [vmem:[%s0] sm:$0x3]
    %s53 = sld [smem:[#allocation2]]
    %v54 = vstv %s53
    %v55 = vmul.f32 %v52, %v54
    %s56 = sld [smem:[#allocation5]]
    %v57 = vstv %s56
    %v58 = vadd.f32 %v55, %v57
    %v59 = vmul.f32 %v58, %v58
    %v60 = vmul.f32 %v59, 0.044715
    %v61 = vadd.f32 %v60, 1.0
    %v62 = vmul.f32 %v58, %v61
    %v63 = vmul.f32 %v58, 0.5
    %v64 = vmul.f32 %v62, 0.7978846
    %v65 = vtanh.pop %v64
    %v66 = vadd.f32 %v65, 1.0
    %v67 = vmul.f32 %v63, %v66
    %68 = vst [vmem:[#allocation7] sm:$0x3] %v67
    %s69 = sld [smem:[#allocation2 + $0x1]]
    %v70 = vstv %s69
    %v71 = vmul.f32 %v52, %v70
    %s72 = sld [smem:[#allocation5 + $0x1]]
    %v73 = vstv %s72
    %v74 = vadd.f32 %v71, %v73
    %v75 = vmul.f32 %v74, %v74
    %v76 = vmul.f32 %v75, 0.044715
    %v77 = vadd.f32 %v76, 1.0
    %v78 = vmul.f32 %v74, %v77
    %v79 = vmul.f32 %v74, 0.5
    %v80 = vmul.f32 %v78, 0.7978846
    %v81 = vtanh.pop %v80
    %v82 = vadd.f32 %v81, 1.0
    %v83 = vmul.f32 %v79, %v82
    %s84 = scalar_lea.vmem [#allocation7], 2
    %85 = vst [vmem:[%s84] sm:$0x3] %v83
    %s86 = sld [smem:[#allocation2 + $0x2]]
    %v87 = vstv %s86
    %v88 = vmul.f32 %v52, %v87
    %s89 = sld [smem:[#allocation5 + $0x2]]
    %v90 = vstv %s89
    %v91 = vadd.f32 %v88, %v90
    %v92 = vmul.f32 %v91, %v91
    %v93 = vmul.f32 %v92, 0.044715
    %v94 = vadd.f32 %v93, 1.0
    %v95 = vmul.f32 %v91, %v94
    %v96 = vmul.f32 %v91, 0.5
    %v97 = vmul.f32 %v95, 0.7978846
    %v98 = vtanh.pop %v97
    %v99 = vadd.f32 %v98, 1.0
    %v100 = vmul.f32 %v96, %v99
    %s101 = scalar_lea.vmem [#allocation7], 4
    %102 = vst [vmem:[%s101] sm:$0x3] %v100
    %v103 = vld [vmem:[%s3] sm:$0xff]
    %v104 = vld [vmem:[%s3 + $0x8] sm:$0xf]
    %v105 = vld [vmem:[%s3 + $0xc] sm:$0xff]
    %v106 = vld [vmem:[%s3 + $0x14] sm:$0xf]
    %v107 = vld [vmem:[%s3 + $0x18] sm:$0xff]
    %v108 = vld [vmem:[%s3 + $0x20] sm:$0xf]
    %v109 = vld [vmem:[%s3 + $0x24] sm:$0xff]
    %v110 = vld [vmem:[%s3 + $0x2c] sm:$0xf]
    %v111 = vld [vmem:[%s3 + $0x30] sm:$0xff]
    %v112 = vld [vmem:[%s3 + $0x38] sm:$0xf]
    %v113 = vld [vmem:[%s3 + $0x3c] sm:$0xff]
    %v114 = vld [vmem:[%s3 + $0x44] sm:$0xf]
    %v115 = vld [vmem:[%s3 + $0x48] sm:$0xff]
    %v116 = vld [vmem:[%s3 + $0x50] sm:$0xf]
    %v117 = vld [vmem:[%s3 + $0x54] sm:$0xff]
    %v118 = vld [vmem:[%s3 + $0x5c] sm:$0xf]
    %v119 = vld [vmem:[%s3 + $0x60] sm:$0xff]
    %v120 = vld [vmem:[%s3 + $0x68] sm:$0xf]
    %v121 = vld [vmem:[%s4] sm:$0xf]
    %v122 = vld [vmem:[%s4 + $0x4] sm:$0xf]
    %v123 = vld [vmem:[%s4 + $0x8] sm:$0xf]
    %v124 = vld [vmem:[%s4 + $0xc] sm:$0xf]
    %v125 = vld [vmem:[%s4 + $0x10] sm:$0xf]
    %v126 = vld [vmem:[%s4 + $0x14] sm:$0xf]
    %v127 = vld [vmem:[%s4 + $0x18] sm:$0xf]
    %v128 = vld [vmem:[%s4 + $0x1c] sm:$0xf]
    %v129 = vld [vmem:[%s4 + $0x20] sm:$0xf]
    %v130 = vld [vmem:[%s4 + $0x24] sm:$0xf]
    %v131 = vld [vmem:[%s4 + $0x28] sm:$0xf]
    %v132 = vld [vmem:[%s4 + $0x2c] sm:$0xf]
    %v133 = vld [vmem:[%s4 + $0x30] sm:$0xf]
    %v134 = vld [vmem:[%s4 + $0x34] sm:$0xf]
    %v135 = vld [vmem:[%s4 + $0x38] sm:$0xf]
    %v136 = vld [vmem:[%s4 + $0x3c] sm:$0xf]
    %v137 = vld [vmem:[%s4 + $0x40] sm:$0xf]
    %v138 = vld [vmem:[%s4 + $0x44] sm:$0xf]
    %v139 = vld [vmem:[%s4 + $0x48] sm:$0xf]
    %v140 = vld [vmem:[%s4 + $0x4c] sm:$0xf]
    %v141 = vld [vmem:[%s4 + $0x50] sm:$0xf]
    %v142 = vld [vmem:[%s4 + $0x54] sm:$0xf]
    %v143 = vld [vmem:[%s4 + $0x58] sm:$0xf]
    %v144 = vld [vmem:[%s4 + $0x5c] sm:$0xf]
    %v145 = vld [vmem:[%s4 + $0x60] sm:$0xf]
    %v146 = vld [vmem:[%s4 + $0x64] sm:$0xf]
    %v147 = vld [vmem:[%s4 + $0x68] sm:$0xf]
    %v148 = vld [vmem:[%s4 + $0x6c] sm:$0xf]
    %v149 = vld [vmem:[%s4 + $0x70] sm:$0xf]
    %v150 = vld [vmem:[%s4 + $0x74] sm:$0xf]
    %v151 = vld [vmem:[%s4 + $0x78] sm:$0xf]
    %v152 = vld [vmem:[%s4 + $0x7c] sm:$0xf]
    %v153 = vld [vmem:[%s4 + $0x80] sm:$0xf]
    %v154 = vld [vmem:[%s4 + $0x84] sm:$0xf]
    %v155 = vld [vmem:[%s4 + $0x88] sm:$0xf]
    %v156 = vld [vmem:[%s4 + $0x8c] sm:$0xf]
    %v157 = vld [vmem:[%s4 + $0x90] sm:$0x7]
    %v158 = vld [vmem:[%s5] sm:$0x1]
    %v160 = vlaneseq
    %v161 = vshrl.u32 %v160, 7
    %v162 = vsub.s32 0, %v161
    %v163 = vrot.slane %v158, %v162
    %v183 = vunpack.c.l.b16 %v103
    %v184 = vunpack.c.h.b16 %v103
    %v185 = vunpack.c.l.b16 %v104
    %v186 = vunpack.c.l.b16 %v105
    %v187 = vunpack.c.h.b16 %v105
    %v188 = vunpack.c.l.b16 %v106
    %v189 = vunpack.c.l.b16 %v107
    %v190 = vunpack.c.h.b16 %v107
    %v191 = vunpack.c.l.b16 %v108
    %v192 = vunpack.c.l.b16 %v109
    %v193 = vunpack.c.h.b16 %v109
    %v194 = vunpack.c.l.b16 %v110
    %v195 = vunpack.c.l.b16 %v111
    %v196 = vunpack.c.h.b16 %v111
    %v197 = vunpack.c.l.b16 %v112
    %v198 = vunpack.c.l.b16 %v113
    %v199 = vunpack.c.h.b16 %v113
    %v200 = vunpack.c.l.b16 %v114
    %v201 = vunpack.c.l.b16 %v115
    %v202 = vunpack.c.h.b16 %v115
    %v203 = vunpack.c.l.b16 %v116
    %v204 = vunpack.c.l.b16 %v117
    %v205 = vunpack.c.h.b16 %v117
    %v206 = vunpack.c.l.b16 %v118
    %v207 = vunpack.c.l.b16 %v119
    %v208 = vunpack.c.h.b16 %v119
    %v209 = vunpack.c.l.b16 %v120
    %v210 = vpack.c.b16 %v186, %v183
    %v211 = vpack.c.b16 %v187, %v184
    %v212 = vpack.c.b16 %v188, %v185
    %v213 = vpack.c.b16 %v192, %v189
    %v214 = vpack.c.b16 %v193, %v190
    %v215 = vpack.c.b16 %v194, %v191
    %v216 = vpack.c.b16 %v198, %v195
    %v217 = vpack.c.b16 %v199, %v196
    %v218 = vpack.c.b16 %v200, %v197
    %v219 = vpack.c.b16 %v204, %v201
    %v220 = vpack.c.b16 %v205, %v202
    %v221 = vpack.c.b16 %v206, %v203
    %v222 = vpack.c.b16 %v207, %v207
    %v223 = vpack.c.b16 %v208, %v208
    %v224 = vpack.c.b16 %v209, %v209
    %v272 = vunpack.c.l.b16 %v121
    %v273 = vunpack.c.l.b16 %v122
    %v274 = vunpack.c.l.b16 %v123
    %v275 = vunpack.c.l.b16 %v124
    %v276 = vunpack.c.l.b16 %v125
    %v277 = vunpack.c.l.b16 %v126
    %v278 = vunpack.c.l.b16 %v127
    %v279 = vunpack.c.l.b16 %v128
    %v280 = vunpack.c.l.b16 %v129
    %v281 = vunpack.c.l.b16 %v130
    %v282 = vunpack.c.l.b16 %v131
    %v283 = vunpack.c.l.b16 %v132
    %v284 = vunpack.c.l.b16 %v133
    %v285 = vunpack.c.l.b16 %v134
    %v286 = vunpack.c.l.b16 %v135
    %v287 = vunpack.c.l.b16 %v136
    %v288 = vunpack.c.l.b16 %v137
    %v289 = vunpack.c.l.b16 %v138
    %v290 = vunpack.c.l.b16 %v139
    %v291 = vunpack.c.l.b16 %v140
    %v292 = vunpack.c.l.b16 %v141
    %v293 = vunpack.c.l.b16 %v142
    %v294 = vunpack.c.l.b16 %v143
    %v295 = vunpack.c.l.b16 %v144
    %v296 = vunpack.c.l.b16 %v145
    %v297 = vunpack.c.l.b16 %v146
    %v298 = vunpack.c.l.b16 %v147
    %v299 = vunpack.c.l.b16 %v148
    %v300 = vunpack.c.l.b16 %v149
    %v301 = vunpack.c.l.b16 %v150
    %v302 = vunpack.c.l.b16 %v151
    %v303 = vunpack.c.l.b16 %v152
    %v304 = vunpack.c.l.b16 %v153
    %v305 = vunpack.c.l.b16 %v154
    %v306 = vunpack.c.l.b16 %v155
    %v307 = vunpack.c.l.b16 %v156
    %v308 = vunpack.c.l.b16 %v157
    %v309 = vpack.c.b16 %v273, %v272
    %v310 = vpack.c.b16 %v275, %v274
    %v311 = vpack.c.b16 %v277, %v276
    %v312 = vpack.c.b16 %v279, %v278
    %v313 = vpack.c.b16 %v281, %v280
    %v314 = vpack.c.b16 %v283, %v282
    %v315 = vpack.c.b16 %v285, %v284
    %v316 = vpack.c.b16 %v287, %v286
    %v317 = vpack.c.b16 %v289, %v288
    %v318 = vpack.c.b16 %v291, %v290
    %v319 = vpack.c.b16 %v293, %v292
    %v320 = vpack.c.b16 %v295, %v294
    %v321 = vpack.c.b16 %v297, %v296
    %v322 = vpack.c.b16 %v299, %v298
    %v323 = vpack.c.b16 %v301, %v300
    %v324 = vpack.c.b16 %v303, %v302
    %v325 = vpack.c.b16 %v305, %v304
    %v326 = vpack.c.b16 %v307, %v306
    %v327 = vpack.c.b16 %v308, %v308
    %vm346 = vcmask 310272
    %v348 = vsel %vm346, %v212, 0
    %v351 = vsel %vm346, %v215, 0
    %v354 = vsel %vm346, %v218, 0
    %v357 = vsel %vm346, %v221, 0
    %v360 = vsel %vm346, %v224, 0
    %vm362 = vcmask 1042432
    %v364 = vsel %vm362, %v327, 0
    %366 = vmatprep.subr.bf16.mxu0 0
    %367 = vmatpush1.bf16.msra.mxu0 %v316
    %368 = vmatprep.subr.bf16.mxu0 0
    %369 = vmatpush1.bf16.msra.mxu0 %v315
    %370 = vmatprep.subr.bf16.mxu0 0
    %371 = vmatpush1.bf16.msra.mxu0 %v314
    %372 = vmatprep.subr.bf16.mxu0 0
    %373 = vmatpush1.bf16.msra.mxu0 %v313
    %374 = vmatprep.subr.bf16.mxu0 0
    %375 = vmatpush1.bf16.msra.mxu0 %v312
    %376 = vmatprep.subr.bf16.mxu0 0
    %377 = vmatpush1.bf16.msra.mxu0 %v311
    %378 = vmatprep.subr.bf16.mxu0 0
    %379 = vmatpush1.bf16.msra.mxu0 %v310
    %380 = vmatprep.subr.bf16.mxu0 0
    %381 = vmatpush1.bf16.msra.mxu0 %v309
    %382 = vmatprep.subr.bf16.mxu0 0
    %383 = vmatpush2.bf16.msra.mxu0 %v324
    %384 = vmatprep.subr.bf16.mxu0 0
    %385 = vmatpush2.bf16.msra.mxu0 %v323
    %386 = vmatprep.subr.bf16.mxu0 0
    %387 = vmatpush2.bf16.msra.mxu0 %v322
    %388 = vmatprep.subr.bf16.mxu0 0
    %389 = vmatpush2.bf16.msra.mxu0 %v321
    %390 = vmatprep.subr.bf16.mxu0 0
    %391 = vmatpush2.bf16.msra.mxu0 %v320
    %392 = vmatprep.subr.bf16.mxu0 0
    %393 = vmatpush2.bf16.msra.mxu0 %v319
    %394 = vmatprep.subr.bf16.mxu0 0
    %395 = vmatpush2.bf16.msra.mxu0 %v318
    %396 = vmatprep.subr.bf16.mxu0 0
    %397 = vmatpush2.bf16.msra.mxu0 %v317
    %398 = vmatprep.mubr.bf16.mxu0 %v211
    %399 = vmatmul.mubr.bf16.gmra.mxu0 %v210
    %v400 = vpop.f32.mrf.mxu0
    %v401 = vadd.f32 %v163, %v400
    %v402 = vpop.f32.mrf.mxu0
    %v403 = vpop.f32.mrf.mxu0
    %v404 = vadd.f32 %v163, %v403
    %v405 = vpop.f32.mrf.mxu0
    %406 = vmatprep.mubr.bf16.mxu0 %v214
    %407 = vmatmul.mubr.bf16.gmra.mxu0 %v213
    %v408 = vpop.f32.mrf.mxu0
    %v409 = vadd.f32 %v163, %v408
    %v410 = vpop.f32.mrf.mxu0
    %v411 = vpop.f32.mrf.mxu0
    %v412 = vadd.f32 %v163, %v411
    %v413 = vpop.f32.mrf.mxu0
    %414 = vmatprep.mubr.bf16.mxu0 %v217
    %415 = vmatmul.mubr.bf16.gmra.mxu0 %v216
    %v416 = vpop.f32.mrf.mxu0
    %v417 = vadd.f32 %v163, %v416
    %v418 = vpop.f32.mrf.mxu0
    %v419 = vpop.f32.mrf.mxu0
    %v420 = vadd.f32 %v163, %v419
    %v421 = vpop.f32.mrf.mxu0
    %422 = vmatprep.mubr.bf16.mxu0 %v220
    %423 = vmatmul.mubr.bf16.gmra.mxu0 %v219
    %v424 = vpop.f32.mrf.mxu0
    %v425 = vadd.f32 %v163, %v424
    %v426 = vpop.f32.mrf.mxu0
    %v427 = vpop.f32.mrf.mxu0
    %v428 = vadd.f32 %v163, %v427
    %v429 = vpop.f32.mrf.mxu0
    %430 = vmatprep.mubr.bf16.mxu0 %v223
    %431 = vmatmul.mubr.bf16.gmra.mxu0 %v222
    %v432 = vpop.f32.mrf.mxu0
    %v433 = vadd.f32 %v163, %v432
    %v434 = vpop.f32.mrf.mxu0
    %v435 = vpop.f32.mrf.mxu0
    %v436 = vpop.f32.mrf.mxu0
    %437 = vdwg.mxu0
    %438 = vmatprep.subr.bf16.mxu0 0
    %439 = vmatpush1.bf16.msra.mxu0 0
    %440 = vmatprep.subr.bf16.mxu0 0
    %441 = vmatpush1.bf16.msra.mxu0 0
    %442 = vmatprep.subr.bf16.mxu0 0
    %443 = vmatpush1.bf16.msra.mxu0 0
    %444 = vmatprep.subr.bf16.mxu0 0
    %445 = vmatpush1.bf16.msra.mxu0 0
    %446 = vmatprep.subr.bf16.mxu0 0
    %447 = vmatpush1.bf16.msra.mxu0 0
    %448 = vmatprep.subr.bf16.mxu0 0
    %449 = vmatpush1.bf16.msra.mxu0 %v364
    %450 = vmatprep.subr.bf16.mxu0 0
    %451 = vmatpush1.bf16.msra.mxu0 %v326
    %452 = vmatprep.subr.bf16.mxu0 0
    %453 = vmatpush1.bf16.msra.mxu0 %v325
    %454 = vmatprep.subr.bf16.mxu0 0
    %455 = vmatpush2.bf16.msra.mxu0 0
    %456 = vmatprep.subr.bf16.mxu0 0
    %457 = vmatpush2.bf16.msra.mxu0 0
    %458 = vmatprep.subr.bf16.mxu0 0
    %459 = vmatpush2.bf16.msra.mxu0 0
    %460 = vmatprep.subr.bf16.mxu0 0
    %461 = vmatpush2.bf16.msra.mxu0 0
    %462 = vmatprep.subr.bf16.mxu0 0
    %463 = vmatpush2.bf16.msra.mxu0 0
    %464 = vmatprep.subr.bf16.mxu0 0
    %465 = vmatpush2.bf16.msra.mxu0 0
    %466 = vmatprep.subr.bf16.mxu0 0
    %467 = vmatpush2.bf16.msra.mxu0 0
    %468 = vmatprep.subr.bf16.mxu0 0
    %469 = vmatpush2.bf16.msra.mxu0 0
    %470 = vmatprep.mubr.bf16.mxu0 0
    %471 = vmatmul.mubr.bf16.gmra.mxu0 %v348
    %v472 = vpop.f32.mrf.mxu0
    %v473 = vadd.f32 %v401, %v472
    %v474 = vpop.f32.mrf.mxu0
    %v475 = vpop.f32.mrf.mxu0
    %v476 = vadd.f32 %v404, %v475
    %v477 = vpop.f32.mrf.mxu0
    %478 = vmatprep.mubr.bf16.mxu0 0
    %479 = vmatmul.mubr.bf16.gmra.mxu0 %v351
    %v480 = vpop.f32.mrf.mxu0
    %v481 = vadd.f32 %v409, %v480
    %v482 = vpop.f32.mrf.mxu0
    %v483 = vpop.f32.mrf.mxu0
    %v484 = vadd.f32 %v412, %v483
    %v485 = vpop.f32.mrf.mxu0
    %486 = vmatprep.mubr.bf16.mxu0 0
    %487 = vmatmul.mubr.bf16.gmra.mxu0 %v354
    %v488 = vpop.f32.mrf.mxu0
    %v489 = vadd.f32 %v417, %v488
    %v490 = vpop.f32.mrf.mxu0
    %v491 = vpop.f32.mrf.mxu0
    %v492 = vadd.f32 %v420, %v491
    %v493 = vpop.f32.mrf.mxu0
    %494 = vmatprep.mubr.bf16.mxu0 0
    %495 = vmatmul.mubr.bf16.gmra.mxu0 %v357
    %v496 = vpop.f32.mrf.mxu0
    %v497 = vadd.f32 %v425, %v496
    %v498 = vpop.f32.mrf.mxu0
    %v499 = vpop.f32.mrf.mxu0
    %v500 = vadd.f32 %v428, %v499
    %v501 = vpop.f32.mrf.mxu0
    %502 = vmatprep.mubr.bf16.mxu0 0
    %503 = vmatmul.mubr.bf16.gmra.mxu0 %v360
    %v504 = vpop.f32.mrf.mxu0
    %v505 = vadd.f32 %v433, %v504
    %v506 = vpop.f32.mrf.mxu0
    %v507 = vpop.f32.mrf.mxu0
    %v508 = vpop.f32.mrf.mxu0
    %509 = vdwg.mxu0
    %510 = vst [vmem:[%s7] sm:$0xff] %v473
    %511 = vst [vmem:[%s7 + $0x8] sm:$0xff] %v476
    %512 = vst [vmem:[%s7 + $0x10] sm:$0xff] %v481
    %513 = vst [vmem:[%s7 + $0x18] sm:$0xff] %v484
    %514 = vst [vmem:[%s7 + $0x20] sm:$0xff] %v489
    %515 = vst [vmem:[%s7 + $0x28] sm:$0xff] %v492
    %516 = vst [vmem:[%s7 + $0x30] sm:$0xff] %v497
    %517 = vst [vmem:[%s7 + $0x38] sm:$0xff] %v500
    %518 = vst [vmem:[%s7 + $0x40] sm:$0xff] %v505
    // Predicated region
    $region34: #{_forward.1} parent=1 // pred_check
      _
    $region35: #{_forward.1} parent=1 // pred_check_branch
      %520 = sbr.rel (0) target = $region37
    $region36: #{_forward.1} parent=1 // pred_region
      %s522 = ssub.s32 96, 96
      %523 = vsyncadd [#allocation3], %s522
      %s524 = sshll.u32 [#allocation7], 4
      %s525 = int_to_ptr.vmem [resolvable:$true] %s524
      %530 = dma.vmem_to_hbm [thread:$0]  %s525, 96, %s6, [#allocation3], 32, 32, 2
    $region37: #{_forward.1} parent=1 // pred_fallthru
      _
    // Predicated region
    $region38: #{_forward.1} parent=1 // pred_check
      _
    $region39: #{_forward.1} parent=1 // pred_check_branch
      %532 = sbr.rel (0) target = $region41
    $region40: #{_forward.1} parent=1 // pred_region
      _
    $region41: #{_forward.1} parent=1 // pred_fallthru
      _
    // Predicated region
    $region42: #{_forward.1} parent=1 // pred_check
      _
    $region43: #{_forward.1} parent=1 // pred_check_branch
      %534 = sbr.rel (0) target = $region45
    $region44: #{_forward.1} parent=1 // pred_region
      %535 = dma.done [#allocation3], 96
    $region45: #{_forward.1} parent=1 // pred_fallthru
      _
    // Predicated region
    $region46: #{_forward.1} parent=1 // pred_check
      _
    $region47: #{_forward.1} parent=1 // pred_check_branch
      %537 = sbr.rel (0) target = $region49
    $region48: #{_forward.1} parent=1 // pred_region
      _
    $region49: #{_forward.1} parent=1 // pred_fallthru
      _
    %538 = vsyncpa [#allocation3], 1
    %539 = vsyncpa [#allocation4], 1
    %540 = vsyncpa [#allocation6], 1

</llo_original>
